<compile_context>
chip_gen: v7x
topology: tpu7x:2x2x1
jax: 0.10.0
libtpu: 0.0.40
codegen_flags: <defaults>
</compile_context>

<pallas_src>
import jax
import jax.numpy as jnp
from jax import lax
from jax.experimental import pallas as pl
from jax.experimental.pallas import tpu as pltpu


def basic_block_kernel(x_ref, w1_ref, w2_ref, b1_ref, b2_ref, o_ref):
    # x_ref  : (NB, H, W*Cp)  bf16 activations (NB images per grid step)
    # w1_ref : (3, W*Cp, W*Cp) bf16 banded conv1 weights (BN1 scale folded in)
    # w2_ref : (3, W*Cp, W*Cp) bf16 banded conv2 weights (BN2 scale folded in)
    # b1_ref, b2_ref : (1, W*Cp) f32 folded BatchNorm biases
    # o_ref  : (NB, H, W*Cp)  f32 output
    NB, H, LANE = x_ref.shape
    M = NB * H

    # Load once; flatten NB*H into the matmul M dimension (layout no-op since
    # H is a multiple of the sublane tile).  f32 copy for shifts + residual.
    x_bf = x_ref[...].reshape(M, LANE)          # bf16 (M, LANE)
    x32 = x_bf.astype(jnp.float32)              # f32  (M, LANE)

    # Per-image row index: the +-1 row shifts must NOT leak across the NB
    # images folded into M.  H is a power of two here, so a VPU bitwise AND
    # replaces an integer mod.
    flat = lax.broadcasted_iota(jnp.int32, (M, 1), 0)
    if (H & (H - 1)) == 0:
        r = jnp.bitwise_and(flat, H - 1)
    else:
        r = flat % H  # TODO(synk): verify vector-rem lowering for non-pow2 H
    not_top = r >= 1           # row has a valid y-1 neighbour in its image
    not_bot = r < (H - 1)      # row has a valid y+1 neighbour in its image

    def conv3x3(a32, a_bf, w_ref):
        """3x3 conv of the (M, LANE) slab -> (M, LANE) f32 accumulator."""
        # +-1 row shift with per-image zero boundary: XLU roll on f32 + VPU
        # select; the center operand is cast to bf16 only once by the caller.
        a_dn = jnp.where(not_top, pltpu.roll(a32, 1, axis=0), 0.0)      # a[y-1]
        a_up = jnp.where(not_bot, pltpu.roll(a32, M - 1, axis=0), 0.0)  # a[y+1]
        acc = jnp.dot(a_dn.astype(jnp.bfloat16), w_ref[0],
                      preferred_element_type=jnp.float32)
        acc = acc + jnp.dot(a_bf, w_ref[1],
                            preferred_element_type=jnp.float32)
        acc = acc + jnp.dot(a_up.astype(jnp.bfloat16), w_ref[2],
                            preferred_element_type=jnp.float32)
        return acc

    # conv1 -> bn1 -> relu   (BN1 scale already folded into w1 columns)
    h1 = jnp.maximum(conv3x3(x32, x_bf, w1_ref) + b1_ref[...], 0.0)
    h1_bf = h1.astype(jnp.bfloat16)

    # conv2 -> bn2 -> + residual -> relu   (epilogue in f32)
    h2 = conv3x3(h1, h1_bf, w2_ref) + b2_ref[...]
    out = jnp.maximum(h2 + x32, 0.0)
    o_ref[...] = out.reshape(NB, H, LANE).astype(o_ref.dtype)


def _banded_conv_weights(w_hwio, W):
    """(3, 3, Cin, Cout) conv weights -> (3, W*Cin, W*Cout) banded matrices.

    B[ky][x1*Cin + c, x2*Cout + o] = w[ky, x1 - x2 + 1, c, o]  if |x1-x2| <= 1
                                     0                          otherwise
    so (a_row @ B[ky]) performs the kx/channel part of the 3x3 conv for one
    image row, with the x-boundary (padding=1) zeros encoded in the band.
    """
    KH, KW, Cin, Cout = w_hwio.shape
    x1 = jnp.arange(W)[:, None]            # input column  (rows of B)
    x2 = jnp.arange(W)[None, :]            # output column (cols of B)
    d = x1 - x2
    tap = jnp.clip(d + 1, 0, 2)            # kx index
    valid = (jnp.abs(d) <= 1)[:, :, None, None]
    slabs = []
    for ky in range(KH):
        band = jnp.where(valid, w_hwio[ky][tap], 0.0)          # (W, W, Cin, Cout)
        slabs.append(band.transpose(0, 2, 1, 3).reshape(W * Cin, W * Cout))
    return jnp.stack(slabs, axis=0)


@jax.jit
def basic_block_forward(x_nhwc, w1_hwio, w2_hwio, scale1, bias1, scale2, bias2):
    """x_nhwc: (N,H,W,C).  w*_hwio: (3,3,Cin,Cout).  scale/bias: (Cout,)."""
    N, H, W, C = x_nhwc.shape
    Cout = w1_hwio.shape[3]
    assert Cout == C, "identity residual requires Cin == Cout"

    # ---- lane density: pad channels so W*Cp is a multiple of 128 ----------
    Cp = C
    while (W * Cp) % 128 != 0 and (Cp - C) < 128:
        Cp += 1
    if (W * Cp) % 128 != 0:
        Cp = C                      # fall back (masked stores), still correct
    LANE = W * Cp

    # ---- weights: fold BN scale (f32), pad channels, band, cast to bf16 ---
    def pack(w_hwio, scale):
        w = w_hwio * scale[None, None, None, :]                 # fold scale
        wp = jnp.zeros((3, 3, Cp, Cp), jnp.float32).at[:, :, :C, :Cout].set(w)
        return _banded_conv_weights(wp, W).astype(jnp.bfloat16)

    w1b = pack(w1_hwio, scale1)                 # (3, LANE, LANE) bf16
    w2b = pack(w2_hwio, scale2)
    pad_c = (0, Cp - Cout)
    b1 = jnp.tile(jnp.pad(bias1, pad_c), W).reshape(1, LANE).astype(jnp.float32)
    b2 = jnp.tile(jnp.pad(bias2, pad_c), W).reshape(1, LANE).astype(jnp.float32)

    # ---- activations: fold NB images per grid step into the matmul M dim --
    NB = min(N, max(1, 256 // H))               # target M = NB*H ~ 256 rows
    NBLK = (N + NB - 1) // NB
    Np = NBLK * NB
    xp = jnp.pad(x_nhwc, ((0, Np - N), (0, 0), (0, 0), (0, Cp - C)))
    x2d = xp.reshape(Np, H, LANE).astype(jnp.bfloat16)   # bf16 activations

    out = pl.pallas_call(
        basic_block_kernel,
        out_shape=jax.ShapeDtypeStruct((Np, H, LANE), jnp.float32),
        grid_spec=pltpu.PrefetchScalarGridSpec(
            num_scalar_prefetch=0,
            grid=(NBLK,),
            in_specs=[
                pl.BlockSpec((NB, H, LANE), lambda b: (b, 0, 0)),
                pl.BlockSpec((3, LANE, LANE), lambda b: (0, 0, 0)),
                pl.BlockSpec((3, LANE, LANE), lambda b: (0, 0, 0)),
                pl.BlockSpec((1, LANE), lambda b: (0, 0)),
                pl.BlockSpec((1, LANE), lambda b: (0, 0)),
            ],
            out_specs=pl.BlockSpec((NB, H, LANE), lambda b: (b, 0, 0)),
        ),
        compiler_params=pltpu.CompilerParams(
            dimension_semantics=("parallel",),
            vmem_limit_bytes=32 * 1024 * 1024),
    )(x2d, w1b, w2b, b1, b2)

    return out.reshape(Np, H, W, Cp)[:N, :, :, :C]


def _fold_bn(gamma, beta, mean, var, eps=1e-5):
    scale = gamma / jnp.sqrt(var + eps)
    bias = beta - mean * scale
    return scale, bias


def _reference(x_nhwc, w1_hwio, w2_hwio, s1, b1, s2, b2):
    """Plain-JAX f32 reference of the same forward pass (sanity check)."""
    dn = ("NHWC", "HWIO", "NHWC")
    h = lax.conv_general_dilated(x_nhwc, w1_hwio, (1, 1),
                                 ((1, 1), (1, 1)), dimension_numbers=dn)
    h = jnp.maximum(h * s1 + b1, 0.0)
    h = lax.conv_general_dilated(h, w2_hwio, (1, 1),
                                 ((1, 1), (1, 1)), dimension_numbers=dn)
    h = h * s2 + b2
    return jnp.maximum(h + x_nhwc, 0.0)


if __name__ == "__main__":
    key = jax.random.PRNGKey(0)
    (k_x, k_w1, k_w2, k_g1, k_b1, k_g2, k_b2,
     k_m1, k_v1, k_m2, k_v2) = jax.random.split(key, 11)

    N, C, H, W = 2, 4, 16, 16                     # BasicBlock with Cin == Cout
    x_nchw = jax.random.normal(k_x, (N, C, H, W), jnp.float32)
    x_nhwc = jnp.transpose(x_nchw, (0, 2, 3, 1))  # NCHW -> NHWC (layout glue)

    # Conv weights, PyTorch-shaped (Cout, Cin, 3, 3), deterministic init.
    w1_oihw = 0.1 * jax.random.normal(k_w1, (C, C, 3, 3), jnp.float32)
    w2_oihw = 0.1 * jax.random.normal(k_w2, (C, C, 3, 3), jnp.float32)
    w1_hwio = jnp.transpose(w1_oihw, (2, 3, 1, 0))
    w2_hwio = jnp.transpose(w2_oihw, (2, 3, 1, 0))

    # BatchNorm parameters (inference / running stats), deterministic.
    g1 = 1.0 + 0.1 * jax.random.normal(k_g1, (C,), jnp.float32)
    be1 = 0.1 * jax.random.normal(k_b1, (C,), jnp.float32)
    m1 = 0.1 * jax.random.normal(k_m1, (C,), jnp.float32)
    v1 = 1.0 + 0.1 * jax.random.uniform(k_v1, (C,), jnp.float32)
    g2 = 1.0 + 0.1 * jax.random.normal(k_g2, (C,), jnp.float32)
    be2 = 0.1 * jax.random.normal(k_b2, (C,), jnp.float32)
    m2 = 0.1 * jax.random.normal(k_m2, (C,), jnp.float32)
    v2 = 1.0 + 0.1 * jax.random.uniform(k_v2, (C,), jnp.float32)

    s1, bb1 = _fold_bn(g1, be1, m1, v1)
    s2, bb2 = _fold_bn(g2, be2, m2, v2)

    out = basic_block_forward(x_nhwc, w1_hwio, w2_hwio, s1, bb1, s2, bb2)
    out = jax.block_until_ready(out)

    ref = _reference(x_nhwc, w1_hwio, w2_hwio, s1, bb1, s2, bb2)
    assert out.shape == (N, H, W, C)
    err = jnp.max(jnp.abs(out - ref))
    # bf16 activations + bf16 (BN-scale-folded) MXU weights -> loosened
    # tolerance; accumulation and the BN-bias / residual / ReLU epilogue
    # stay in f32.
    assert jnp.allclose(out, ref, atol=7.5e-2, rtol=7.5e-2), f"max abs err = {err}"

    print("KERNEL_OK")
</pallas_src>

<mosaic_0001>
module attributes {stable_mosaic.version = 11 : i64} {
  func.func @basic_block_kernel(%arg0: i32, %arg1: memref<2x16x128xbf16, #tpu.memory_space<vmem>>, %arg2: memref<3x128x128xbf16, #tpu.memory_space<vmem>>, %arg3: memref<3x128x128xbf16, #tpu.memory_space<vmem>>, %arg4: memref<1x128xf32, #tpu.memory_space<vmem>>, %arg5: memref<1x128xf32, #tpu.memory_space<vmem>>, %arg6: memref<2x16x128xf32, #tpu.memory_space<vmem>>) attributes {dimension_semantics = [#tpu.dimension_semantics<parallel>], iteration_bounds = array<i64: 1>, scalar_prefetch = 0 : i64, scratch_operands = 0 : i64, tpu.core_type = #tpu.core_type<tc>, window_params = [{transform_indices = @transform_0, window_bounds = array<i64: 2, 16, 128>}, {pipeline_mode = #tpu.pipeline_mode<synchronous>, transform_indices = @transform_1, window_bounds = array<i64: 3, 128, 128>}, {pipeline_mode = #tpu.pipeline_mode<synchronous>, transform_indices = @transform_2, window_bounds = array<i64: 3, 128, 128>}, {pipeline_mode = #tpu.pipeline_mode<synchronous>, transform_indices = @transform_3, window_bounds = array<i64: 1, 128>}, {pipeline_mode = #tpu.pipeline_mode<synchronous>, transform_indices = @transform_4, window_bounds = array<i64: 1, 128>}, {transform_indices = @transform_5, window_bounds = array<i64: 2, 16, 128>}]} {
    %c0 = arith.constant 0 : index
    %c0_0 = arith.constant 0 : index
    %c0_1 = arith.constant 0 : index
    %0 = vector.load %arg1[%c0, %c0_0, %c0_1] : memref<2x16x128xbf16, #tpu.memory_space<vmem>>, vector<2x16x128xbf16>
    %1 = vector.shape_cast %0 : vector<2x16x128xbf16> to vector<32x128xbf16>
    %2 = arith.extf %1 : vector<32x128xbf16> to vector<32x128xf32>
    %3 = tpu.iota {dimensions = array<i32: 0>} : vector<32x1xi32>
    %c15_i32 = arith.constant 15 : i32
    %4 = vector.broadcast %c15_i32 : i32 to vector<32x1xi32>
    %5 = arith.andi %3, %4 : vector<32x1xi32>
    %c1_i32 = arith.constant 1 : i32
    %6 = vector.broadcast %c1_i32 : i32 to vector<32x1xi32>
    %7 = arith.cmpi sge, %5, %6 : vector<32x1xi32>
    %c15_i32_2 = arith.constant 15 : i32
    %8 = vector.broadcast %c15_i32_2 : i32 to vector<32x1xi32>
    %9 = arith.cmpi slt, %5, %8 : vector<32x1xi32>
    %c1_i32_3 = arith.constant 1 : i32
    %10 = tpu.dynamic_rotate %2 by %c1_i32_3 dim 0 : vector<32x128xf32>, i32 -> vector<32x128xf32>
    %cst = arith.constant 0.000000e+00 : f32
    %11 = vector.shape_cast %7 : vector<32x1xi1> to vector<32x1xi1>
    %12 = vector.broadcast %11 : vector<32x1xi1> to vector<32x128xi1>
    %13 = vector.broadcast %cst : f32 to vector<32x128xf32>
    %14 = arith.select %12, %10, %13 : vector<32x128xi1>, vector<32x128xf32>
    %c31_i32 = arith.constant 31 : i32
    %15 = tpu.dynamic_rotate %2 by %c31_i32 dim 0 : vector<32x128xf32>, i32 -> vector<32x128xf32>
    %cst_4 = arith.constant 0.000000e+00 : f32
    %16 = vector.shape_cast %9 : vector<32x1xi1> to vector<32x1xi1>
    %17 = vector.broadcast %16 : vector<32x1xi1> to vector<32x128xi1>
    %18 = vector.broadcast %cst_4 : f32 to vector<32x128xf32>
    %19 = arith.select %17, %15, %18 : vector<32x128xi1>, vector<32x128xf32>
    %20 = arith.truncf %14 : vector<32x128xf32> to vector<32x128xbf16>
    %c0_5 = arith.constant 0 : index
    %c0_6 = arith.constant 0 : index
    %c0_7 = arith.constant 0 : index
    %21 = vector.load %arg2[%c0_5, %c0_6, %c0_7] : memref<3x128x128xbf16, #tpu.memory_space<vmem>>, vector<1x128x128xbf16>
    %22 = vector.shape_cast %21 : vector<1x128x128xbf16> to vector<128x128xbf16>
    %cst_8 = arith.constant dense<0.000000e+00> : vector<32x128xf32>
    %23 = tpu.matmul %20, %22, %cst_8 {dimension_numbers = #tpu.dot_dimension_numbers<[1], [0], [0], [1], [0, 0, 1, 1], [], []>} : vector<32x128xbf16>, vector<128x128xbf16>, vector<32x128xf32> -> vector<32x128xf32>
    %c1 = arith.constant 1 : index
    %c0_9 = arith.constant 0 : index
    %c0_10 = arith.constant 0 : index
    %24 = vector.load %arg2[%c1, %c0_9, %c0_10] : memref<3x128x128xbf16, #tpu.memory_space<vmem>>, vector<1x128x128xbf16>
    %25 = vector.shape_cast %24 : vector<1x128x128xbf16> to vector<128x128xbf16>
    %cst_11 = arith.constant dense<0.000000e+00> : vector<32x128xf32>
    %26 = tpu.matmul %1, %25, %cst_11 {dimension_numbers = #tpu.dot_dimension_numbers<[1], [0], [0], [1], [0, 0, 1, 1], [], []>} : vector<32x128xbf16>, vector<128x128xbf16>, vector<32x128xf32> -> vector<32x128xf32>
    %27 = arith.addf %23, %26 : vector<32x128xf32>
    %28 = arith.truncf %19 : vector<32x128xf32> to vector<32x128xbf16>
    %c2 = arith.constant 2 : index
    %c0_12 = arith.constant 0 : index
    %c0_13 = arith.constant 0 : index
    %29 = vector.load %arg2[%c2, %c0_12, %c0_13] : memref<3x128x128xbf16, #tpu.memory_space<vmem>>, vector<1x128x128xbf16>
    %30 = vector.shape_cast %29 : vector<1x128x128xbf16> to vector<128x128xbf16>
    %cst_14 = arith.constant dense<0.000000e+00> : vector<32x128xf32>
    %31 = tpu.matmul %28, %30, %cst_14 {dimension_numbers = #tpu.dot_dimension_numbers<[1], [0], [0], [1], [0, 0, 1, 1], [], []>} : vector<32x128xbf16>, vector<128x128xbf16>, vector<32x128xf32> -> vector<32x128xf32>
    %32 = arith.addf %27, %31 : vector<32x128xf32>
    %c0_15 = arith.constant 0 : index
    %c0_16 = arith.constant 0 : index
    %33 = vector.load %arg4[%c0_15, %c0_16] : memref<1x128xf32, #tpu.memory_space<vmem>>, vector<1x128xf32>
    %34 = vector.broadcast %33 : vector<1x128xf32> to vector<32x128xf32>
    %35 = arith.addf %32, %34 : vector<32x128xf32>
    %cst_17 = arith.constant 0.000000e+00 : f32
    %36 = vector.broadcast %cst_17 : f32 to vector<32x128xf32>
    %37 = arith.maximumf %35, %36 : vector<32x128xf32>
    %38 = arith.truncf %37 : vector<32x128xf32> to vector<32x128xbf16>
    %c1_i32_18 = arith.constant 1 : i32
    %39 = tpu.dynamic_rotate %37 by %c1_i32_18 dim 0 : vector<32x128xf32>, i32 -> vector<32x128xf32>
    %cst_19 = arith.constant 0.000000e+00 : f32
    %40 = vector.shape_cast %7 : vector<32x1xi1> to vector<32x1xi1>
    %41 = vector.broadcast %40 : vector<32x1xi1> to vector<32x128xi1>
    %42 = vector.broadcast %cst_19 : f32 to vector<32x128xf32>
    %43 = arith.select %41, %39, %42 : vector<32x128xi1>, vector<32x128xf32>
    %c31_i32_20 = arith.constant 31 : i32
    %44 = tpu.dynamic_rotate %37 by %c31_i32_20 dim 0 : vector<32x128xf32>, i32 -> vector<32x128xf32>
    %cst_21 = arith.constant 0.000000e+00 : f32
    %45 = vector.shape_cast %9 : vector<32x1xi1> to vector<32x1xi1>
    %46 = vector.broadcast %45 : vector<32x1xi1> to vector<32x128xi1>
    %47 = vector.broadcast %cst_21 : f32 to vector<32x128xf32>
    %48 = arith.select %46, %44, %47 : vector<32x128xi1>, vector<32x128xf32>
    %49 = arith.truncf %43 : vector<32x128xf32> to vector<32x128xbf16>
    %c0_22 = arith.constant 0 : index
    %c0_23 = arith.constant 0 : index
    %c0_24 = arith.constant 0 : index
    %50 = vector.load %arg3[%c0_22, %c0_23, %c0_24] : memref<3x128x128xbf16, #tpu.memory_space<vmem>>, vector<1x128x128xbf16>
    %51 = vector.shape_cast %50 : vector<1x128x128xbf16> to vector<128x128xbf16>
    %cst_25 = arith.constant dense<0.000000e+00> : vector<32x128xf32>
    %52 = tpu.matmul %49, %51, %cst_25 {dimension_numbers = #tpu.dot_dimension_numbers<[1], [0], [0], [1], [0, 0, 1, 1], [], []>} : vector<32x128xbf16>, vector<128x128xbf16>, vector<32x128xf32> -> vector<32x128xf32>
    %c1_26 = arith.constant 1 : index
    %c0_27 = arith.constant 0 : index
    %c0_28 = arith.constant 0 : index
    %53 = vector.load %arg3[%c1_26, %c0_27, %c0_28] : memref<3x128x128xbf16, #tpu.memory_space<vmem>>, vector<1x128x128xbf16>
    %54 = vector.shape_cast %53 : vector<1x128x128xbf16> to vector<128x128xbf16>
    %cst_29 = arith.constant dense<0.000000e+00> : vector<32x128xf32>
    %55 = tpu.matmul %38, %54, %cst_29 {dimension_numbers = #tpu.dot_dimension_numbers<[1], [0], [0], [1], [0, 0, 1, 1], [], []>} : vector<32x128xbf16>, vector<128x128xbf16>, vector<32x128xf32> -> vector<32x128xf32>
    %56 = arith.addf %52, %55 : vector<32x128xf32>
    %57 = arith.truncf %48 : vector<32x128xf32> to vector<32x128xbf16>
    %c2_30 = arith.constant 2 : index
    %c0_31 = arith.constant 0 : index
    %c0_32 = arith.constant 0 : index
    %58 = vector.load %arg3[%c2_30, %c0_31, %c0_32] : memref<3x128x128xbf16, #tpu.memory_space<vmem>>, vector<1x128x128xbf16>
    %59 = vector.shape_cast %58 : vector<1x128x128xbf16> to vector<128x128xbf16>
    %cst_33 = arith.constant dense<0.000000e+00> : vector<32x128xf32>
    %60 = tpu.matmul %57, %59, %cst_33 {dimension_numbers = #tpu.dot_dimension_numbers<[1], [0], [0], [1], [0, 0, 1, 1], [], []>} : vector<32x128xbf16>, vector<128x128xbf16>, vector<32x128xf32> -> vector<32x128xf32>
    %61 = arith.addf %56, %60 : vector<32x128xf32>
    %c0_34 = arith.constant 0 : index
    %c0_35 = arith.constant 0 : index
    %62 = vector.load %arg5[%c0_34, %c0_35] : memref<1x128xf32, #tpu.memory_space<vmem>>, vector<1x128xf32>
    %63 = vector.broadcast %62 : vector<1x128xf32> to vector<32x128xf32>
    %64 = arith.addf %61, %63 : vector<32x128xf32>
    %65 = arith.addf %64, %2 : vector<32x128xf32>
    %cst_36 = arith.constant 0.000000e+00 : f32
    %66 = vector.broadcast %cst_36 : f32 to vector<32x128xf32>
    %67 = arith.maximumf %65, %66 : vector<32x128xf32>
    %68 = vector.shape_cast %67 : vector<32x128xf32> to vector<2x16x128xf32>
    %c0_37 = arith.constant 0 : index
    %c0_38 = arith.constant 0 : index
    %c0_39 = arith.constant 0 : index
    %69 = vector.load %arg6[%c0_37, %c0_38, %c0_39] : memref<2x16x128xf32, #tpu.memory_space<vmem>>, vector<2x16x128xf32>
    tpu.vector_store %arg6[%c0_37, %c0_38, %c0_39], %68 {strides = array<i32>} : memref<2x16x128xf32, #tpu.memory_space<vmem>>, vector<2x16x128xf32>,
    return
  }
  func.func @transform_0(%arg0: i32) -> (i32, i32, i32) {
    %c0_i32 = arith.constant 0 : i32
    %c0_i32_0 = arith.constant 0 : i32
    %c0_i32_1 = arith.constant 0 : i32
    return %arg0, %c0_i32, %c0_i32_0 : i32, i32, i32
  }
  func.func @transform_1(%arg0: i32) -> (i32, i32, i32) {
    %c0_i32 = arith.constant 0 : i32
    %c0_i32_0 = arith.constant 0 : i32
    %c0_i32_1 = arith.constant 0 : i32
    %c0_i32_2 = arith.constant 0 : i32
    return %c0_i32, %c0_i32_0, %c0_i32_1 : i32, i32, i32
  }
  func.func @transform_2(%arg0: i32) -> (i32, i32, i32) {
    %c0_i32 = arith.constant 0 : i32
    %c0_i32_0 = arith.constant 0 : i32
    %c0_i32_1 = arith.constant 0 : i32
    %c0_i32_2 = arith.constant 0 : i32
    return %c0_i32, %c0_i32_0, %c0_i32_1 : i32, i32, i32
  }
  func.func @transform_3(%arg0: i32) -> (i32, i32) {
    %c0_i32 = arith.constant 0 : i32
    %c0_i32_0 = arith.constant 0 : i32
    %c0_i32_1 = arith.constant 0 : i32
    return %c0_i32, %c0_i32_0 : i32, i32
  }
  func.func @transform_4(%arg0: i32) -> (i32, i32) {
    %c0_i32 = arith.constant 0 : i32
    %c0_i32_0 = arith.constant 0 : i32
    %c0_i32_1 = arith.constant 0 : i32
    return %c0_i32, %c0_i32_0 : i32, i32
  }
  func.func @transform_5(%arg0: i32) -> (i32, i32, i32) {
    %c0_i32 = arith.constant 0 : i32
    %c0_i32_0 = arith.constant 0 : i32
    %c0_i32_1 = arith.constant 0 : i32
    return %arg0, %c0_i32, %c0_i32_0 : i32, i32, i32
  }
}

</mosaic_0001>

<llo_original>
// kernel: tile.13
$region0: #{tile.13}
  #allocation0 [shape = 's32[1]{0}', space=sflag, size = 0x4, scoped, tag = 'scoped memory for tile.13']
  %s0 = inlined_call_operand.vmem [shape: f32[8], index: 0, kind: input, shape index: {}]
  %s1 = inlined_call_operand.vmem [shape: f32[16,8], index: 1, kind: output, shape index: {}]
  // Predicated region
  $region2: #{tile.13} parent=0 // pred_check
    _
  $region3: #{tile.13} parent=0 // pred_check_branch
    %3 = sbr.rel (0) target = $region5
  $region4: #{tile.13} parent=0 // pred_region
    _
  $region5: #{tile.13} parent=0 // pred_fallthru
    _
  %v4 = vld [vmem:[%s0] ss:$0 sm:$0xff]
  %5 = vst [vmem:[%s1] sm:$0xff] %v4
  %s6 = scalar_lea.vmem %s1, 8
  %7 = vst [vmem:[%s6] sm:$0xff] %v4

// kernel: tile.14
$region0: #{tile.14}
  %s0 = inlined_call_operand.vmem [shape: f32[16,8], index: 0, kind: input, shape index: {}]
  %s1 = inlined_call_operand.vmem [shape: f32[1,128], index: 1, kind: output, shape index: {}]
  $region1: #{tile.14} parent=0
    #allocation0 [shape = 'u8[4096]{0}', space=vmem, size = 0x1000, scoped, tag = 'scoped mem for output reshape']
    %v2 = vld [vmem:[%s0] sm:$0x1]
    %vm3 = vcmask 64512
    %4 = vst.msk [vmem:[#allocation0] sm:$0x1] %vm3, %v2
    %s5 = scalar_lea.vmem %s0, 15
    %v6 = vld [vmem:[%s5] sm:$0x1]
    %7 = vrot.lane.b32.xlu0 %v6, 120
    %v8 = vpop.permute.xlu0 %7
    %vm9 = vcmask 1048512
    %10 = vst.msk [vmem:[#allocation0] sm:$0x1] %vm9, %v8
    %s11 = scalar_lea.vmem %s0, 14
    %v12 = vld [vmem:[%s11] sm:$0x1]
    %13 = vrot.lane.b32.xlu0 %v12, 112
    %v14 = vpop.permute.xlu0 %13
    %vm15 = vcmask 982912
    %16 = vst.msk [vmem:[#allocation0] sm:$0x1] %vm15, %v14
    %s17 = scalar_lea.vmem %s0, 13
    %v18 = vld [vmem:[%s17] sm:$0x1]
    %19 = vrot.lane.b32.xlu0 %v18, 104
    %v20 = vpop.permute.xlu0 %19
    %vm21 = vcmask 917312
    %22 = vst.msk [vmem:[#allocation0] sm:$0x1] %vm21, %v20
    %s23 = scalar_lea.vmem %s0, 12
    %v24 = vld [vmem:[%s23] sm:$0x1]
    %25 = vrot.lane.b32.xlu0 %v24, 96
    %v26 = vpop.permute.xlu0 %25
    %vm27 = vcmask 851712
    %28 = vst.msk [vmem:[#allocation0] sm:$0x1] %vm27, %v26
    %s29 = scalar_lea.vmem %s0, 11
    %v30 = vld [vmem:[%s29] sm:$0x1]
    %31 = vrot.lane.b32.xlu0 %v30, 88
    %v32 = vpop.permute.xlu0 %31
    %vm33 = vcmask 786112
    %34 = vst.msk [vmem:[#allocation0] sm:$0x1] %vm33, %v32
    %s35 = scalar_lea.vmem %s0, 10
    %v36 = vld [vmem:[%s35] sm:$0x1]
    %37 = vrot.lane.b32.xlu0 %v36, 80
    %v38 = vpop.permute.xlu0 %37
    %vm39 = vcmask 720512
    %40 = vst.msk [vmem:[#allocation0] sm:$0x1] %vm39, %v38
    %s41 = scalar_lea.vmem %s0, 9
    %v42 = vld [vmem:[%s41] sm:$0x1]
    %43 = vrot.lane.b32.xlu0 %v42, 72
    %v44 = vpop.permute.xlu0 %43
    %vm45 = vcmask 654912
    %46 = vst.msk [vmem:[#allocation0] sm:$0x1] %vm45, %v44
    %s47 = scalar_lea.vmem %s0, 8
    %v48 = vld [vmem:[%s47] sm:$0x1]
    %49 = vrot.lane.b32.xlu0 %v48, 64
    %v50 = vpop.permute.xlu0 %49
    %vm51 = vcmask 589312
    %52 = vst.msk [vmem:[#allocation0] sm:$0x1] %vm51, %v50
    %s53 = scalar_lea.vmem %s0, 7
    %v54 = vld [vmem:[%s53] sm:$0x1]
    %55 = vrot.lane.b32.xlu0 %v54, 56
    %v56 = vpop.permute.xlu0 %55
    %vm57 = vcmask 523712
    %58 = vst.msk [vmem:[#allocation0] sm:$0x1] %vm57, %v56
    %s59 = scalar_lea.vmem %s0, 6
    %v60 = vld [vmem:[%s59] sm:$0x1]
    %61 = vrot.lane.b32.xlu0 %v60, 48
    %v62 = vpop.permute.xlu0 %61
    %vm63 = vcmask 458112
    %64 = vst.msk [vmem:[#allocation0] sm:$0x1] %vm63, %v62
    %s65 = scalar_lea.vmem %s0, 5
    %v66 = vld [vmem:[%s65] sm:$0x1]
    %67 = vrot.lane.b32.xlu0 %v66, 40
    %v68 = vpop.permute.xlu0 %67
    %vm69 = vcmask 392512
    %70 = vst.msk [vmem:[#allocation0] sm:$0x1] %vm69, %v68
    %s71 = scalar_lea.vmem %s0, 4
    %v72 = vld [vmem:[%s71] sm:$0x1]
    %73 = vrot.lane.b32.xlu0 %v72, 32
    %v74 = vpop.permute.xlu0 %73
    %vm75 = vcmask 326912
    %76 = vst.msk [vmem:[#allocation0] sm:$0x1] %vm75, %v74
    %s77 = scalar_lea.vmem %s0, 3
    %v78 = vld [vmem:[%s77] sm:$0x1]
    %79 = vrot.lane.b32.xlu0 %v78, 24
    %v80 = vpop.permute.xlu0 %79
    %vm81 = vcmask 261312
    %82 = vst.msk [vmem:[#allocation0] sm:$0x1] %vm81, %v80
    %s83 = scalar_lea.vmem %s0, 2
    %v84 = vld [vmem:[%s83] sm:$0x1]
    %85 = vrot.lane.b32.xlu0 %v84, 16
    %v86 = vpop.permute.xlu0 %85
    %vm87 = vcmask 195712
    %88 = vst.msk [vmem:[#allocation0] sm:$0x1] %vm87, %v86
    %s89 = scalar_lea.vmem %s0, 1
    %v90 = vld [vmem:[%s89] sm:$0x1]
    %91 = vrot.lane.b32.xlu0 %v90, 8
    %v92 = vpop.permute.xlu0 %91
    %vm93 = vcmask 130112
    %94 = vst.msk [vmem:[#allocation0] sm:$0x1] %vm93, %v92
    %s96 = sshllo.u32 0, 1
    %v98 = vld [vmem:[#allocation0] sm:%s96]
    %s99 = sshllo.u32 0, 1
    %100 = vst [vmem:[%s1] sm:%s99] %v98

// kernel: basic_block_forward.1
$region0: #{basic_block_forward.1}
  #allocation0 [shape = 'u32[]', space=smem, size = 0x4, offset = 0x4, fixed_abs, tag = 'smem constant byte address 0x4 - core index']
  #allocation1 [shape = 'u32[144,128]{1,0:T(1,128)}', space=vmem, size = 0x12000, scoped, tag = 'internal scratch']
  %s0 = inlined_call_operand.vmem [shape: bf16[2,16,128], index: 0, kind: input, shape index: {}]
  %s1 = inlined_call_operand.vmem [shape: bf16[3,128,128], index: 1, kind: input, shape index: {}]
  %s2 = inlined_call_operand.vmem [shape: bf16[3,128,128], index: 2, kind: input, shape index: {}]
  %s3 = inlined_call_operand.vmem [shape: f32[1,128], index: 3, kind: input, shape index: {}]
  %s4 = inlined_call_operand.vmem [shape: f32[1,128], index: 4, kind: input, shape index: {}]
  %s5 = inlined_call_operand.vmem [shape: f32[2,16,128], index: 5, kind: output, shape index: {}]
  %s6 = sld [smem:[#allocation0]]
  $region30: #{basic_block_forward.1} parent=0
    _
  %s8 = ssub.s32 1, %s6
  %s9 = scalar_select 0, %s8, %s6
  // Predicated region
  $region2: #{basic_block_forward.1} parent=0 // pred_check
    _
  $region3: #{basic_block_forward.1} parent=0 // pred_check_branch
    %11 = sbr.rel (0) target = $region5
  $region4: #{basic_block_forward.1} parent=0 // pred_region
    _
  $region5: #{basic_block_forward.1} parent=0 // pred_fallthru
    _
  // Predicated region
  $region6: #{basic_block_forward.1} parent=0 // pred_check
    _
  $region7: #{basic_block_forward.1} parent=0 // pred_check_branch
    %13 = sbr.rel (0) target = $region9
  $region8: #{basic_block_forward.1} parent=0 // pred_region
    _
  $region9: #{basic_block_forward.1} parent=0 // pred_fallthru
    _
  // Predicated region
  $region10: #{basic_block_forward.1} parent=0 // pred_check
    _
  $region11: #{basic_block_forward.1} parent=0 // pred_check_branch
    %15 = sbr.rel (0) target = $region13
  $region12: #{basic_block_forward.1} parent=0 // pred_region
    _
  $region13: #{basic_block_forward.1} parent=0 // pred_fallthru
    _
  // Predicated region
  $region14: #{basic_block_forward.1} parent=0 // pred_check
    _
  $region15: #{basic_block_forward.1} parent=0 // pred_check_branch
    %17 = sbr.rel (0) target = $region17
  $region16: #{basic_block_forward.1} parent=0 // pred_region
    _
  $region17: #{basic_block_forward.1} parent=0 // pred_fallthru
    _
  // Predicated region
  $region18: #{basic_block_forward.1} parent=0 // pred_check
    _
  $region19: #{basic_block_forward.1} parent=0 // pred_check_branch
    %19 = sbr.rel (0) target = $region21
  $region20: #{basic_block_forward.1} parent=0 // pred_region
    _
  $region21: #{basic_block_forward.1} parent=0 // pred_fallthru
    _
  %v21 = vld [vmem:[%s0] sm:$0xf]
  %v22 = vld [vmem:[%s0 + $0x4] sm:$0xf]
  %v23 = vld [vmem:[%s0 + $0x8] sm:$0xf]
  %v24 = vld [vmem:[%s0 + $0xc] sm:$0xf]
  %v25 = vunpack.c.l.bf16 %v21
  %v26 = vunpack.c.l.bf16 %v22
  %v27 = vunpack.c.l.bf16 %v23
  %v28 = vunpack.c.l.bf16 %v24
  %v29 = vlaneseq
  %v30 = vshrl.u32 %v29, 7
  %v31 = vadd.s32 %v30, 8
  %v32 = vadd.s32 %v30, 16
  %v33 = vadd.s32 %v30, 24
  %v34 = vand.u32 %v30, 15
  %v35 = vand.u32 %v31, 15
  %v36 = vand.u32 %v32, 15
  %v37 = vand.u32 %v33, 15
  %vm38 = vcmp.ge.s32.totalorder %v34, 1
  %vm39 = vcmp.ge.s32.totalorder %v35, 1
  %vm40 = vcmp.ge.s32.totalorder %v36, 1
  %vm41 = vcmp.ge.s32.totalorder %v37, 1
  %vm42 = vcmp.lt.s32.totalorder %v34, 15
  %vm43 = vcmp.lt.s32.totalorder %v35, 15
  %vm44 = vcmp.lt.s32.totalorder %v36, 15
  %vm45 = vcmp.lt.s32.totalorder %v37, 15
  %v46 = vrot.slane %v25, 7
  %v47 = vrot.slane %v26, 7
  %v48 = vrot.slane %v27, 7
  %v49 = vrot.slane %v28, 7
  %vm50 = vcmp.lt.s32.totalorder %v30, 1
  %v51 = vsel %vm50, %v48, %v49
  %v52 = vsel %vm50, %v47, %v48
  %v53 = vsel %vm50, %v46, %v47
  %v54 = vsel %vm50, %v49, %v46
  %v55 = vsel %vm38, 1, 0
  %v56 = vsel %vm39, 1, 0
  %v57 = vsel %vm40, 1, 0
  %v58 = vsel %vm41, 1, 0
  %vm59 = vcmp.eq.s32.totalorder %v55, 1
  %vm60 = vcmp.eq.s32.totalorder %v56, 1
  %vm61 = vcmp.eq.s32.totalorder %v57, 1
  %vm62 = vcmp.eq.s32.totalorder %v58, 1
  %v63 = vsel %vm59, %v54, 0.0
  %v64 = vsel %vm60, %v53, 0.0
  %v65 = vsel %vm61, %v52, 0.0
  %v66 = vsel %vm62, %v51, 0.0
  %v67 = vrot.slane %v25, 1
  %v68 = vrot.slane %v26, 1
  %v69 = vrot.slane %v27, 1
  %v70 = vrot.slane %v28, 1
  %vm71 = vcmp.lt.s32.totalorder %v30, 7
  %v72 = vsel %vm71, %v69, %v70
  %v73 = vsel %vm71, %v68, %v69
  %v74 = vsel %vm71, %v67, %v68
  %v75 = vsel %vm71, %v70, %v67
  %v76 = vsel %vm42, 1, 0
  %v77 = vsel %vm43, 1, 0
  %v78 = vsel %vm44, 1, 0
  %v79 = vsel %vm45, 1, 0
  %vm80 = vcmp.eq.s32.totalorder %v76, 1
  %vm81 = vcmp.eq.s32.totalorder %v77, 1
  %vm82 = vcmp.eq.s32.totalorder %v78, 1
  %vm83 = vcmp.eq.s32.totalorder %v79, 1
  %v84 = vsel %vm80, %v74, 0.0
  %v85 = vsel %vm81, %v73, 0.0
  %v86 = vsel %vm82, %v72, 0.0
  %v87 = vsel %vm83, %v75, 0.0
  %v88 = vpack.c.bf16 %v64, %v63
  %v89 = vpack.c.bf16 %v66, %v65
  %v90 = vld [vmem:[%s1] sm:$0xf]
  %v91 = vld [vmem:[%s1 + $0x4] sm:$0xf]
  %v92 = vld [vmem:[%s1 + $0x8] sm:$0xf]
  %v93 = vld [vmem:[%s1 + $0xc] sm:$0xf]
  %v94 = vld [vmem:[%s1 + $0x10] sm:$0xf]
  %v95 = vld [vmem:[%s1 + $0x14] sm:$0xf]
  %v96 = vld [vmem:[%s1 + $0x18] sm:$0xf]
  %v97 = vld [vmem:[%s1 + $0x1c] sm:$0xf]
  %v98 = vld [vmem:[%s1 + $0x20] sm:$0xf]
  %v99 = vld [vmem:[%s1 + $0x24] sm:$0xf]
  %v100 = vld [vmem:[%s1 + $0x28] sm:$0xf]
  %v101 = vld [vmem:[%s1 + $0x2c] sm:$0xf]
  %v102 = vld [vmem:[%s1 + $0x30] sm:$0xf]
  %v103 = vld [vmem:[%s1 + $0x34] sm:$0xf]
  %v104 = vld [vmem:[%s1 + $0x38] sm:$0xf]
  %v105 = vld [vmem:[%s1 + $0x3c] sm:$0xf]
  %s106 = scalar_lea.vmem %s1, 64
  %v107 = vld [vmem:[%s106] sm:$0xf]
  %v108 = vld [vmem:[%s106 + $0x4] sm:$0xf]
  %v109 = vld [vmem:[%s106 + $0x8] sm:$0xf]
  %v110 = vld [vmem:[%s106 + $0xc] sm:$0xf]
  %v111 = vld [vmem:[%s106 + $0x10] sm:$0xf]
  %v112 = vld [vmem:[%s106 + $0x14] sm:$0xf]
  %v113 = vld [vmem:[%s106 + $0x18] sm:$0xf]
  %v114 = vld [vmem:[%s106 + $0x1c] sm:$0xf]
  %v115 = vld [vmem:[%s106 + $0x20] sm:$0xf]
  %v116 = vld [vmem:[%s106 + $0x24] sm:$0xf]
  %v117 = vld [vmem:[%s106 + $0x28] sm:$0xf]
  %v118 = vld [vmem:[%s106 + $0x2c] sm:$0xf]
  %v119 = vld [vmem:[%s106 + $0x30] sm:$0xf]
  %v120 = vld [vmem:[%s106 + $0x34] sm:$0xf]
  %v121 = vld [vmem:[%s106 + $0x38] sm:$0xf]
  %v122 = vld [vmem:[%s106 + $0x3c] sm:$0xf]
  %v127 = vunpack.c.l.b16 %v21
  %v128 = vunpack.c.l.b16 %v22
  %v129 = vunpack.c.l.b16 %v23
  %v130 = vunpack.c.l.b16 %v24
  %v131 = vpack.c.b16 %v128, %v127
  %v132 = vpack.c.b16 %v130, %v129
  %v151 = vunpack.c.l.b16 %v107
  %v152 = vunpack.c.l.b16 %v108
  %v153 = vunpack.c.l.b16 %v109
  %v154 = vunpack.c.l.b16 %v110
  %v155 = vunpack.c.l.b16 %v111
  %v156 = vunpack.c.l.b16 %v112
  %v157 = vunpack.c.l.b16 %v113
  %v158 = vunpack.c.l.b16 %v114
  %v159 = vunpack.c.l.b16 %v115
  %v160 = vunpack.c.l.b16 %v116
  %v161 = vunpack.c.l.b16 %v117
  %v162 = vunpack.c.l.b16 %v118
  %v163 = vunpack.c.l.b16 %v119
  %v164 = vunpack.c.l.b16 %v120
  %v165 = vunpack.c.l.b16 %v121
  %v166 = vunpack.c.l.b16 %v122
  %v167 = vpack.c.b16 %v152, %v151
  %v168 = vpack.c.b16 %v154, %v153
  %v169 = vpack.c.b16 %v156, %v155
  %v170 = vpack.c.b16 %v158, %v157
  %v171 = vpack.c.b16 %v160, %v159
  %v172 = vpack.c.b16 %v162, %v161
  %v173 = vpack.c.b16 %v164, %v163
  %v174 = vpack.c.b16 %v166, %v165
  %183 = vmatprep.subr.bf16.mxu0 0
  %184 = vmatpush1.bf16.msra.mxu0 %v167
  %185 = vmatprep.subr.bf16.mxu0 0
  %186 = vmatpush1.bf16.msra.mxu0 %v168
  %187 = vmatprep.subr.bf16.mxu0 0
  %188 = vmatpush1.bf16.msra.mxu0 %v169
  %189 = vmatprep.subr.bf16.mxu0 0
  %190 = vmatpush1.bf16.msra.mxu0 %v170
  %191 = vmatprep.subr.bf16.mxu0 0
  %192 = vmatpush1.bf16.msra.mxu0 %v171
  %193 = vmatprep.subr.bf16.mxu0 0
  %194 = vmatpush1.bf16.msra.mxu0 %v172
  %195 = vmatprep.subr.bf16.mxu0 0
  %196 = vmatpush1.bf16.msra.mxu0 %v173
  %197 = vmatprep.subr.bf16.mxu0 0
  %198 = vmatpush1.bf16.msra.mxu0 %v174
  %199 = vmatprep.subr.bf16.mxu0 0
  %200 = vmatpush1.bf16.msra.mxu0 0
  %201 = vmatprep.subr.bf16.mxu0 0
  %202 = vmatpush1.bf16.msra.mxu0 0
  %203 = vmatprep.subr.bf16.mxu0 0
  %204 = vmatpush1.bf16.msra.mxu0 0
  %205 = vmatprep.subr.bf16.mxu0 0
  %206 = vmatpush1.bf16.msra.mxu0 0
  %207 = vmatprep.subr.bf16.mxu0 0
  %208 = vmatpush1.bf16.msra.mxu0 0
  %209 = vmatprep.subr.bf16.mxu0 0
  %210 = vmatpush1.bf16.msra.mxu0 0
  %211 = vmatprep.subr.bf16.mxu0 0
  %212 = vmatpush1.bf16.msra.mxu0 0
  %213 = vmatprep.subr.bf16.mxu0 0
  %214 = vmatpush1.bf16.msra.mxu0 0
  %215 = vmatprep.mubr.bf16.mxu0 0
  %216 = vmatmul.mubr.bf16.gmra.mrb[0].mxu0 %v131
  %v217 = vpop.f32.mrb[0].mxu0
  %v218 = vadd.f32 0.0, %v217
  %v219 = vpop.f32.mrb[0].mxu0
  %v220 = vpop.f32.mrb[0].mxu0
  %v221 = vadd.f32 0.0, %v220
  %v222 = vpop.f32.mrb[0].mxu0
  %223 = vmatprep.mubr.bf16.mxu0 0
  %224 = vmatmul.mubr.bf16.gmra.mrb[0].mxu0 %v132
  %v225 = vpop.f32.mrb[0].mxu0
  %v226 = vadd.f32 0.0, %v225
  %v227 = vpop.f32.mrb[0].mxu0
  %v228 = vpop.f32.mrb[0].mxu0
  %v229 = vadd.f32 0.0, %v228
  %v230 = vpop.f32.mrb[0].mxu0
  %231 = vdwg.mxu0
  %v248 = vunpack.c.l.b16 %v90
  %v249 = vunpack.c.l.b16 %v91
  %v250 = vunpack.c.l.b16 %v92
  %v251 = vunpack.c.l.b16 %v93
  %v252 = vunpack.c.l.b16 %v94
  %v253 = vunpack.c.l.b16 %v95
  %v254 = vunpack.c.l.b16 %v96
  %v255 = vunpack.c.l.b16 %v97
  %v256 = vunpack.c.l.b16 %v98
  %v257 = vunpack.c.l.b16 %v99
  %v258 = vunpack.c.l.b16 %v100
  %v259 = vunpack.c.l.b16 %v101
  %v260 = vunpack.c.l.b16 %v102
  %v261 = vunpack.c.l.b16 %v103
  %v262 = vunpack.c.l.b16 %v104
  %v263 = vunpack.c.l.b16 %v105
  %v264 = vpack.c.b16 %v249, %v248
  %v265 = vpack.c.b16 %v251, %v250
  %v266 = vpack.c.b16 %v253, %v252
  %v267 = vpack.c.b16 %v255, %v254
  %v268 = vpack.c.b16 %v257, %v256
  %v269 = vpack.c.b16 %v259, %v258
  %v270 = vpack.c.b16 %v261, %v260
  %v271 = vpack.c.b16 %v263, %v262
  %280 = vmatprep.subr.bf16.mxu0 0
  %281 = vmatpush1.bf16.msra.mxu0 %v264
  %282 = vmatprep.subr.bf16.mxu0 0
  %283 = vmatpush1.bf16.msra.mxu0 %v265
  %284 = vmatprep.subr.bf16.mxu0 0
  %285 = vmatpush1.bf16.msra.mxu0 %v266
  %286 = vmatprep.subr.bf16.mxu0 0
  %287 = vmatpush1.bf16.msra.mxu0 %v267
  %288 = vmatprep.subr.bf16.mxu0 0
  %289 = vmatpush1.bf16.msra.mxu0 %v268
  %290 = vmatprep.subr.bf16.mxu0 0
  %291 = vmatpush1.bf16.msra.mxu0 %v269
  %292 = vmatprep.subr.bf16.mxu0 0
  %293 = vmatpush1.bf16.msra.mxu0 %v270
  %294 = vmatprep.subr.bf16.mxu0 0
  %295 = vmatpush1.bf16.msra.mxu0 %v271
  %296 = vmatprep.subr.bf16.mxu0 0
  %297 = vmatpush1.bf16.msra.mxu0 0
  %298 = vmatprep.subr.bf16.mxu0 0
  %299 = vmatpush1.bf16.msra.mxu0 0
  %300 = vmatprep.subr.bf16.mxu0 0
  %301 = vmatpush1.bf16.msra.mxu0 0
  %302 = vmatprep.subr.bf16.mxu0 0
  %303 = vmatpush1.bf16.msra.mxu0 0
  %304 = vmatprep.subr.bf16.mxu0 0
  %305 = vmatpush1.bf16.msra.mxu0 0
  %306 = vmatprep.subr.bf16.mxu0 0
  %307 = vmatpush1.bf16.msra.mxu0 0
  %308 = vmatprep.subr.bf16.mxu0 0
  %309 = vmatpush1.bf16.msra.mxu0 0
  %310 = vmatprep.subr.bf16.mxu0 0
  %311 = vmatpush1.bf16.msra.mxu0 0
  %312 = vmatprep.mubr.bf16.mxu0 0
  %313 = vmatmul.mubr.bf16.gmra.mrb[0].mxu0 %v88
  %v314 = vpop.f32.mrb[0].mxu0
  %v315 = vadd.f32 %v218, %v314
  %v316 = vpop.f32.mrb[0].mxu0
  %v317 = vpop.f32.mrb[0].mxu0
  %v318 = vadd.f32 %v221, %v317
  %v319 = vpop.f32.mrb[0].mxu0
  %320 = vmatprep.mubr.bf16.mxu0 0
  %321 = vmatmul.mubr.bf16.gmra.mrb[0].mxu0 %v89
  %v322 = vpop.f32.mrb[0].mxu0
  %v323 = vadd.f32 %v226, %v322
  %v324 = vpop.f32.mrb[0].mxu0
  %v325 = vpop.f32.mrb[0].mxu0
  %v326 = vadd.f32 %v229, %v325
  %v327 = vpop.f32.mrb[0].mxu0
  %328 = vdwg.mxu0
  %v329 = vpack.c.bf16 %v85, %v84
  %v330 = vpack.c.bf16 %v87, %v86
  %s331 = scalar_lea.vmem %s1, 128
  %v332 = vld [vmem:[%s331] sm:$0xf]
  %v333 = vld [vmem:[%s331 + $0x4] sm:$0xf]
  %v334 = vld [vmem:[%s331 + $0x8] sm:$0xf]
  %v335 = vld [vmem:[%s331 + $0xc] sm:$0xf]
  %v336 = vld [vmem:[%s331 + $0x10] sm:$0xf]
  %v337 = vld [vmem:[%s331 + $0x14] sm:$0xf]
  %v338 = vld [vmem:[%s331 + $0x18] sm:$0xf]
  %v339 = vld [vmem:[%s331 + $0x1c] sm:$0xf]
  %v340 = vld [vmem:[%s331 + $0x20] sm:$0xf]
  %v341 = vld [vmem:[%s331 + $0x24] sm:$0xf]
  %v342 = vld [vmem:[%s331 + $0x28] sm:$0xf]
  %v343 = vld [vmem:[%s331 + $0x2c] sm:$0xf]
  %v344 = vld [vmem:[%s331 + $0x30] sm:$0xf]
  %v345 = vld [vmem:[%s331 + $0x34] sm:$0xf]
  %v346 = vld [vmem:[%s331 + $0x38] sm:$0xf]
  %v347 = vld [vmem:[%s331 + $0x3c] sm:$0xf]
  %v364 = vunpack.c.l.b16 %v332
  %v365 = vunpack.c.l.b16 %v333
  %v366 = vunpack.c.l.b16 %v334
  %v367 = vunpack.c.l.b16 %v335
  %v368 = vunpack.c.l.b16 %v336
  %v369 = vunpack.c.l.b16 %v337
  %v370 = vunpack.c.l.b16 %v338
  %v371 = vunpack.c.l.b16 %v339
  %v372 = vunpack.c.l.b16 %v340
  %v373 = vunpack.c.l.b16 %v341
  %v374 = vunpack.c.l.b16 %v342
  %v375 = vunpack.c.l.b16 %v343
  %v376 = vunpack.c.l.b16 %v344
  %v377 = vunpack.c.l.b16 %v345
  %v378 = vunpack.c.l.b16 %v346
  %v379 = vunpack.c.l.b16 %v347
  %v380 = vpack.c.b16 %v365, %v364
  %v381 = vpack.c.b16 %v367, %v366
  %v382 = vpack.c.b16 %v369, %v368
  %v383 = vpack.c.b16 %v371, %v370
  %v384 = vpack.c.b16 %v373, %v372
  %v385 = vpack.c.b16 %v375, %v374
  %v386 = vpack.c.b16 %v377, %v376
  %v387 = vpack.c.b16 %v379, %v378
  %396 = vmatprep.subr.bf16.mxu0 0
  %397 = vmatpush1.bf16.msra.mxu0 %v380
  %398 = vmatprep.subr.bf16.mxu0 0
  %399 = vmatpush1.bf16.msra.mxu0 %v381
  %400 = vmatprep.subr.bf16.mxu0 0
  %401 = vmatpush1.bf16.msra.mxu0 %v382
  %402 = vmatprep.subr.bf16.mxu0 0
  %403 = vmatpush1.bf16.msra.mxu0 %v383
  %404 = vmatprep.subr.bf16.mxu0 0
  %405 = vmatpush1.bf16.msra.mxu0 %v384
  %406 = vmatprep.subr.bf16.mxu0 0
  %407 = vmatpush1.bf16.msra.mxu0 %v385
  %408 = vmatprep.subr.bf16.mxu0 0
  %409 = vmatpush1.bf16.msra.mxu0 %v386
  %410 = vmatprep.subr.bf16.mxu0 0
  %411 = vmatpush1.bf16.msra.mxu0 %v387
  %412 = vmatprep.subr.bf16.mxu0 0
  %413 = vmatpush1.bf16.msra.mxu0 0
  %414 = vmatprep.subr.bf16.mxu0 0
  %415 = vmatpush1.bf16.msra.mxu0 0
  %416 = vmatprep.subr.bf16.mxu0 0
  %417 = vmatpush1.bf16.msra.mxu0 0
  %418 = vmatprep.subr.bf16.mxu0 0
  %419 = vmatpush1.bf16.msra.mxu0 0
  %420 = vmatprep.subr.bf16.mxu0 0
  %421 = vmatpush1.bf16.msra.mxu0 0
  %422 = vmatprep.subr.bf16.mxu0 0
  %423 = vmatpush1.bf16.msra.mxu0 0
  %424 = vmatprep.subr.bf16.mxu0 0
  %425 = vmatpush1.bf16.msra.mxu0 0
  %426 = vmatprep.subr.bf16.mxu0 0
  %427 = vmatpush1.bf16.msra.mxu0 0
  %428 = vmatprep.mubr.bf16.mxu0 0
  %429 = vmatmul.mubr.bf16.gmra.mrb[0].mxu0 %v329
  %v430 = vpop.f32.mrb[0].mxu0
  %v431 = vadd.f32 0.0, %v430
  %v432 = vpop.f32.mrb[0].mxu0
  %v433 = vpop.f32.mrb[0].mxu0
  %v434 = vadd.f32 0.0, %v433
  %v435 = vpop.f32.mrb[0].mxu0
  %436 = vmatprep.mubr.bf16.mxu0 0
  %437 = vmatmul.mubr.bf16.gmra.mrb[0].mxu0 %v330
  %v438 = vpop.f32.mrb[0].mxu0
  %v439 = vadd.f32 0.0, %v438
  %v440 = vpop.f32.mrb[0].mxu0
  %v441 = vpop.f32.mrb[0].mxu0
  %v442 = vadd.f32 0.0, %v441
  %v443 = vpop.f32.mrb[0].mxu0
  %444 = vdwg.mxu0
  %v445 = vadd.f32 %v315, %v431
  %v446 = vadd.f32 %v318, %v434
  %v447 = vadd.f32 %v323, %v439
  %v448 = vadd.f32 %v326, %v442
  %v449 = vld [vmem:[%s3] sm:$0x1]
  %v451 = vlaneseq
  %v452 = vshrl.u32 %v451, 7
  %v453 = vsub.s32 0, %v452
  %v454 = vrot.slane %v449, %v453
  %v456 = vadd.f32 %v445, %v454
  %v457 = vadd.f32 %v446, %v454
  %v458 = vadd.f32 %v447, %v454
  %v459 = vadd.f32 %v448, %v454
  %v460 = vmax.f32 %v456, 0.0
  %v461 = vmax.f32 %v457, 0.0
  %v462 = vmax.f32 %v458, 0.0
  %v463 = vmax.f32 %v459, 0.0
  %v464 = vpack.c.bf16 %v461, %v460
  %v465 = vpack.c.bf16 %v463, %v462
  %v466 = vrot.slane %v460, 7
  %v467 = vrot.slane %v461, 7
  %v468 = vrot.slane %v462, 7
  %v469 = vrot.slane %v463, 7
  %v470 = vsel %vm50, %v468, %v469
  %v471 = vsel %vm50, %v467, %v468
  %v472 = vsel %vm50, %v466, %v467
  %v473 = vsel %vm50, %v469, %v466
  %v474 = vsel %vm59, %v473, 0.0
  %v475 = vsel %vm60, %v472, 0.0
  %v476 = vsel %vm61, %v471, 0.0
  %v477 = vsel %vm62, %v470, 0.0
  %v478 = vrot.slane %v460, 1
  %v479 = vrot.slane %v461, 1
  %v480 = vrot.slane %v462, 1
  %v481 = vrot.slane %v463, 1
  %v482 = vsel %vm71, %v480, %v481
  %v483 = vsel %vm71, %v479, %v480
  %v484 = vsel %vm71, %v478, %v479
  %v485 = vsel %vm71, %v481, %v478
  %v486 = vsel %vm80, %v484, 0.0
  %v487 = vsel %vm81, %v483, 0.0
  %v488 = vsel %vm82, %v482, 0.0
  %v489 = vsel %vm83, %v485, 0.0
  %v490 = vpack.c.bf16 %v475, %v474
  %v491 = vpack.c.bf16 %v477, %v476
  %v492 = vld [vmem:[%s2] sm:$0xf]
  %v493 = vld [vmem:[%s2 + $0x4] sm:$0xf]
  %v494 = vld [vmem:[%s2 + $0x8] sm:$0xf]
  %v495 = vld [vmem:[%s2 + $0xc] sm:$0xf]
  %v496 = vld [vmem:[%s2 + $0x10] sm:$0xf]
  %v497 = vld [vmem:[%s2 + $0x14] sm:$0xf]
  %v498 = vld [vmem:[%s2 + $0x18] sm:$0xf]
  %v499 = vld [vmem:[%s2 + $0x1c] sm:$0xf]
  %v500 = vld [vmem:[%s2 + $0x20] sm:$0xf]
  %v501 = vld [vmem:[%s2 + $0x24] sm:$0xf]
  %v502 = vld [vmem:[%s2 + $0x28] sm:$0xf]
  %v503 = vld [vmem:[%s2 + $0x2c] sm:$0xf]
  %v504 = vld [vmem:[%s2 + $0x30] sm:$0xf]
  %v505 = vld [vmem:[%s2 + $0x34] sm:$0xf]
  %v506 = vld [vmem:[%s2 + $0x38] sm:$0xf]
  %v507 = vld [vmem:[%s2 + $0x3c] sm:$0xf]
  %s508 = scalar_lea.vmem %s2, 64
  %v509 = vld [vmem:[%s508] sm:$0xf]
  %v510 = vld [vmem:[%s508 + $0x4] sm:$0xf]
  %v511 = vld [vmem:[%s508 + $0x8] sm:$0xf]
  %v512 = vld [vmem:[%s508 + $0xc] sm:$0xf]
  %v513 = vld [vmem:[%s508 + $0x10] sm:$0xf]
  %v514 = vld [vmem:[%s508 + $0x14] sm:$0xf]
  %v515 = vld [vmem:[%s508 + $0x18] sm:$0xf]
  %v516 = vld [vmem:[%s508 + $0x1c] sm:$0xf]
  %v517 = vld [vmem:[%s508 + $0x20] sm:$0xf]
  %v518 = vld [vmem:[%s508 + $0x24] sm:$0xf]
  %v519 = vld [vmem:[%s508 + $0x28] sm:$0xf]
  %v520 = vld [vmem:[%s508 + $0x2c] sm:$0xf]
  %v521 = vld [vmem:[%s508 + $0x30] sm:$0xf]
  %v522 = vld [vmem:[%s508 + $0x34] sm:$0xf]
  %v523 = vld [vmem:[%s508 + $0x38] sm:$0xf]
  %v524 = vld [vmem:[%s508 + $0x3c] sm:$0xf]
  %v541 = vunpack.c.l.b16 %v509
  %v542 = vunpack.c.l.b16 %v510
  %v543 = vunpack.c.l.b16 %v511
  %v544 = vunpack.c.l.b16 %v512
  %v545 = vunpack.c.l.b16 %v513
  %v546 = vunpack.c.l.b16 %v514
  %v547 = vunpack.c.l.b16 %v515
  %v548 = vunpack.c.l.b16 %v516
  %v549 = vunpack.c.l.b16 %v517
  %v550 = vunpack.c.l.b16 %v518
  %v551 = vunpack.c.l.b16 %v519
  %v552 = vunpack.c.l.b16 %v520
  %v553 = vunpack.c.l.b16 %v521
  %v554 = vunpack.c.l.b16 %v522
  %v555 = vunpack.c.l.b16 %v523
  %v556 = vunpack.c.l.b16 %v524
  %v557 = vpack.c.b16 %v542, %v541
  %v558 = vpack.c.b16 %v544, %v543
  %v559 = vpack.c.b16 %v546, %v545
  %v560 = vpack.c.b16 %v548, %v547
  %v561 = vpack.c.b16 %v550, %v549
  %v562 = vpack.c.b16 %v552, %v551
  %v563 = vpack.c.b16 %v554, %v553
  %v564 = vpack.c.b16 %v556, %v555
  %573 = vmatprep.subr.bf16.mxu0 0
  %574 = vmatpush1.bf16.msra.mxu0 %v557
  %575 = vmatprep.subr.bf16.mxu0 0
  %576 = vmatpush1.bf16.msra.mxu0 %v558
  %577 = vmatprep.subr.bf16.mxu0 0
  %578 = vmatpush1.bf16.msra.mxu0 %v559
  %579 = vmatprep.subr.bf16.mxu0 0
  %580 = vmatpush1.bf16.msra.mxu0 %v560
  %581 = vmatprep.subr.bf16.mxu0 0
  %582 = vmatpush1.bf16.msra.mxu0 %v561
  %583 = vmatprep.subr.bf16.mxu0 0
  %584 = vmatpush1.bf16.msra.mxu0 %v562
  %585 = vmatprep.subr.bf16.mxu0 0
  %586 = vmatpush1.bf16.msra.mxu0 %v563
  %587 = vmatprep.subr.bf16.mxu0 0
  %588 = vmatpush1.bf16.msra.mxu0 %v564
  %589 = vmatprep.subr.bf16.mxu0 0
  %590 = vmatpush1.bf16.msra.mxu0 0
  %591 = vmatprep.subr.bf16.mxu0 0
  %592 = vmatpush1.bf16.msra.mxu0 0
  %593 = vmatprep.subr.bf16.mxu0 0
  %594 = vmatpush1.bf16.msra.mxu0 0
  %595 = vmatprep.subr.bf16.mxu0 0
  %596 = vmatpush1.bf16.msra.mxu0 0
  %597 = vmatprep.subr.bf16.mxu0 0
  %598 = vmatpush1.bf16.msra.mxu0 0
  %599 = vmatprep.subr.bf16.mxu0 0
  %600 = vmatpush1.bf16.msra.mxu0 0
  %601 = vmatprep.subr.bf16.mxu0 0
  %602 = vmatpush1.bf16.msra.mxu0 0
  %603 = vmatprep.subr.bf16.mxu0 0
  %604 = vmatpush1.bf16.msra.mxu0 0
  %605 = vmatprep.mubr.bf16.mxu0 0
  %606 = vmatmul.mubr.bf16.gmra.mrb[0].mxu0 %v464
  %v607 = vpop.f32.mrb[0].mxu0
  %v608 = vadd.f32 0.0, %v607
  %v609 = vpop.f32.mrb[0].mxu0
  %v610 = vpop.f32.mrb[0].mxu0
  %v611 = vadd.f32 0.0, %v610
  %v612 = vpop.f32.mrb[0].mxu0
  %613 = vmatprep.mubr.bf16.mxu0 0
  %614 = vmatmul.mubr.bf16.gmra.mrb[0].mxu0 %v465
  %v615 = vpop.f32.mrb[0].mxu0
  %v616 = vadd.f32 0.0, %v615
  %v617 = vpop.f32.mrb[0].mxu0
  %v618 = vpop.f32.mrb[0].mxu0
  %v619 = vadd.f32 0.0, %v618
  %v620 = vpop.f32.mrb[0].mxu0
  %621 = vdwg.mxu0
  %v638 = vunpack.c.l.b16 %v492
  %v639 = vunpack.c.l.b16 %v493
  %v640 = vunpack.c.l.b16 %v494
  %v641 = vunpack.c.l.b16 %v495
  %v642 = vunpack.c.l.b16 %v496
  %v643 = vunpack.c.l.b16 %v497
  %v644 = vunpack.c.l.b16 %v498
  %v645 = vunpack.c.l.b16 %v499
  %v646 = vunpack.c.l.b16 %v500
  %v647 = vunpack.c.l.b16 %v501
  %v648 = vunpack.c.l.b16 %v502
  %v649 = vunpack.c.l.b16 %v503
  %v650 = vunpack.c.l.b16 %v504
  %v651 = vunpack.c.l.b16 %v505
  %v652 = vunpack.c.l.b16 %v506
  %v653 = vunpack.c.l.b16 %v507
  %v654 = vpack.c.b16 %v639, %v638
  %v655 = vpack.c.b16 %v641, %v640
  %v656 = vpack.c.b16 %v643, %v642
  %v657 = vpack.c.b16 %v645, %v644
  %v658 = vpack.c.b16 %v647, %v646
  %v659 = vpack.c.b16 %v649, %v648
  %v660 = vpack.c.b16 %v651, %v650
  %v661 = vpack.c.b16 %v653, %v652
  %670 = vmatprep.subr.bf16.mxu0 0
  %671 = vmatpush1.bf16.msra.mxu0 %v654
  %672 = vmatprep.subr.bf16.mxu0 0
  %673 = vmatpush1.bf16.msra.mxu0 %v655
  %674 = vmatprep.subr.bf16.mxu0 0
  %675 = vmatpush1.bf16.msra.mxu0 %v656
  %676 = vmatprep.subr.bf16.mxu0 0
  %677 = vmatpush1.bf16.msra.mxu0 %v657
  %678 = vmatprep.subr.bf16.mxu0 0
  %679 = vmatpush1.bf16.msra.mxu0 %v658
  %680 = vmatprep.subr.bf16.mxu0 0
  %681 = vmatpush1.bf16.msra.mxu0 %v659
  %682 = vmatprep.subr.bf16.mxu0 0
  %683 = vmatpush1.bf16.msra.mxu0 %v660
  %684 = vmatprep.subr.bf16.mxu0 0
  %685 = vmatpush1.bf16.msra.mxu0 %v661
  %686 = vmatprep.subr.bf16.mxu0 0
  %687 = vmatpush1.bf16.msra.mxu0 0
  %688 = vmatprep.subr.bf16.mxu0 0
  %689 = vmatpush1.bf16.msra.mxu0 0
  %690 = vmatprep.subr.bf16.mxu0 0
  %691 = vmatpush1.bf16.msra.mxu0 0
  %692 = vmatprep.subr.bf16.mxu0 0
  %693 = vmatpush1.bf16.msra.mxu0 0
  %694 = vmatprep.subr.bf16.mxu0 0
  %695 = vmatpush1.bf16.msra.mxu0 0
  %696 = vmatprep.subr.bf16.mxu0 0
  %697 = vmatpush1.bf16.msra.mxu0 0
  %698 = vmatprep.subr.bf16.mxu0 0
  %699 = vmatpush1.bf16.msra.mxu0 0
  %700 = vmatprep.subr.bf16.mxu0 0
  %701 = vmatpush1.bf16.msra.mxu0 0
  %702 = vmatprep.mubr.bf16.mxu0 0
  %703 = vmatmul.mubr.bf16.gmra.mrb[0].mxu0 %v490
  %v704 = vpop.f32.mrb[0].mxu0
  %v705 = vadd.f32 %v608, %v704
  %v706 = vpop.f32.mrb[0].mxu0
  %v707 = vpop.f32.mrb[0].mxu0
  %v708 = vadd.f32 %v611, %v707
  %v709 = vpop.f32.mrb[0].mxu0
  %710 = vmatprep.mubr.bf16.mxu0 0
  %711 = vmatmul.mubr.bf16.gmra.mrb[0].mxu0 %v491
  %v712 = vpop.f32.mrb[0].mxu0
  %v713 = vadd.f32 %v616, %v712
  %v714 = vpop.f32.mrb[0].mxu0
  %v715 = vpop.f32.mrb[0].mxu0
  %v716 = vadd.f32 %v619, %v715
  %v717 = vpop.f32.mrb[0].mxu0
  %718 = vdwg.mxu0
  %v719 = vpack.c.bf16 %v487, %v486
  %v720 = vpack.c.bf16 %v489, %v488
  %s721 = scalar_lea.vmem %s2, 128
  %v722 = vld [vmem:[%s721] sm:$0xf]
  %v723 = vld [vmem:[%s721 + $0x4] sm:$0xf]
  %v724 = vld [vmem:[%s721 + $0x8] sm:$0xf]
  %v725 = vld [vmem:[%s721 + $0xc] sm:$0xf]
  %v726 = vld [vmem:[%s721 + $0x10] sm:$0xf]
  %v727 = vld [vmem:[%s721 + $0x14] sm:$0xf]
  %v728 = vld [vmem:[%s721 + $0x18] sm:$0xf]
  %v729 = vld [vmem:[%s721 + $0x1c] sm:$0xf]
  %v730 = vld [vmem:[%s721 + $0x20] sm:$0xf]
  %v731 = vld [vmem:[%s721 + $0x24] sm:$0xf]
  %v732 = vld [vmem:[%s721 + $0x28] sm:$0xf]
  %v733 = vld [vmem:[%s721 + $0x2c] sm:$0xf]
  %v734 = vld [vmem:[%s721 + $0x30] sm:$0xf]
  %v735 = vld [vmem:[%s721 + $0x34] sm:$0xf]
  %v736 = vld [vmem:[%s721 + $0x38] sm:$0xf]
  %v737 = vld [vmem:[%s721 + $0x3c] sm:$0xf]
  %v754 = vunpack.c.l.b16 %v722
  %v755 = vunpack.c.l.b16 %v723
  %v756 = vunpack.c.l.b16 %v724
  %v757 = vunpack.c.l.b16 %v725
  %v758 = vunpack.c.l.b16 %v726
  %v759 = vunpack.c.l.b16 %v727
  %v760 = vunpack.c.l.b16 %v728
  %v761 = vunpack.c.l.b16 %v729
  %v762 = vunpack.c.l.b16 %v730
  %v763 = vunpack.c.l.b16 %v731
  %v764 = vunpack.c.l.b16 %v732
  %v765 = vunpack.c.l.b16 %v733
  %v766 = vunpack.c.l.b16 %v734
  %v767 = vunpack.c.l.b16 %v735
  %v768 = vunpack.c.l.b16 %v736
  %v769 = vunpack.c.l.b16 %v737
  %v770 = vpack.c.b16 %v755, %v754
  %v771 = vpack.c.b16 %v757, %v756
  %v772 = vpack.c.b16 %v759, %v758
  %v773 = vpack.c.b16 %v761, %v760
  %v774 = vpack.c.b16 %v763, %v762
  %v775 = vpack.c.b16 %v765, %v764
  %v776 = vpack.c.b16 %v767, %v766
  %v777 = vpack.c.b16 %v769, %v768
  %786 = vmatprep.subr.bf16.mxu0 0
  %787 = vmatpush1.bf16.msra.mxu0 %v770
  %788 = vmatprep.subr.bf16.mxu0 0
  %789 = vmatpush1.bf16.msra.mxu0 %v771
  %790 = vmatprep.subr.bf16.mxu0 0
  %791 = vmatpush1.bf16.msra.mxu0 %v772
  %792 = vmatprep.subr.bf16.mxu0 0
  %793 = vmatpush1.bf16.msra.mxu0 %v773
  %794 = vmatprep.subr.bf16.mxu0 0
  %795 = vmatpush1.bf16.msra.mxu0 %v774
  %796 = vmatprep.subr.bf16.mxu0 0
  %797 = vmatpush1.bf16.msra.mxu0 %v775
  %798 = vmatprep.subr.bf16.mxu0 0
  %799 = vmatpush1.bf16.msra.mxu0 %v776
  %800 = vmatprep.subr.bf16.mxu0 0
  %801 = vmatpush1.bf16.msra.mxu0 %v777
  %802 = vmatprep.subr.bf16.mxu0 0
  %803 = vmatpush1.bf16.msra.mxu0 0
  %804 = vmatprep.subr.bf16.mxu0 0
  %805 = vmatpush1.bf16.msra.mxu0 0
  %806 = vmatprep.subr.bf16.mxu0 0
  %807 = vmatpush1.bf16.msra.mxu0 0
  %808 = vmatprep.subr.bf16.mxu0 0
  %809 = vmatpush1.bf16.msra.mxu0 0
  %810 = vmatprep.subr.bf16.mxu0 0
  %811 = vmatpush1.bf16.msra.mxu0 0
  %812 = vmatprep.subr.bf16.mxu0 0
  %813 = vmatpush1.bf16.msra.mxu0 0
  %814 = vmatprep.subr.bf16.mxu0 0
  %815 = vmatpush1.bf16.msra.mxu0 0
  %816 = vmatprep.subr.bf16.mxu0 0
  %817 = vmatpush1.bf16.msra.mxu0 0
  %818 = vmatprep.mubr.bf16.mxu0 0
  %819 = vmatmul.mubr.bf16.gmra.mrb[0].mxu0 %v719
  %v820 = vpop.f32.mrb[0].mxu0
  %v821 = vadd.f32 0.0, %v820
  %v822 = vpop.f32.mrb[0].mxu0
  %v823 = vpop.f32.mrb[0].mxu0
  %v824 = vadd.f32 0.0, %v823
  %v825 = vpop.f32.mrb[0].mxu0
  %826 = vmatprep.mubr.bf16.mxu0 0
  %827 = vmatmul.mubr.bf16.gmra.mrb[0].mxu0 %v720
  %v828 = vpop.f32.mrb[0].mxu0
  %v829 = vadd.f32 0.0, %v828
  %v830 = vpop.f32.mrb[0].mxu0
  %v831 = vpop.f32.mrb[0].mxu0
  %v832 = vadd.f32 0.0, %v831
  %v833 = vpop.f32.mrb[0].mxu0
  %834 = vdwg.mxu0
  %v835 = vadd.f32 %v705, %v821
  %v836 = vadd.f32 %v708, %v824
  %v837 = vadd.f32 %v713, %v829
  %v838 = vadd.f32 %v716, %v832
  %v839 = vld [vmem:[%s4] sm:$0x1]
  %v841 = vlaneseq
  %v842 = vshrl.u32 %v841, 7
  %v843 = vsub.s32 0, %v842
  %v844 = vrot.slane %v839, %v843
  %v846 = vadd.f32 %v835, %v844
  %v847 = vadd.f32 %v836, %v844
  %v848 = vadd.f32 %v837, %v844
  %v849 = vadd.f32 %v838, %v844
  %v850 = vadd.f32 %v846, %v25
  %v851 = vadd.f32 %v847, %v26
  %v852 = vadd.f32 %v848, %v27
  %v853 = vadd.f32 %v849, %v28
  %v854 = vmax.f32 %v850, 0.0
  %v855 = vmax.f32 %v851, 0.0
  %v856 = vmax.f32 %v852, 0.0
  %v857 = vmax.f32 %v853, 0.0
  %858 = vst [vmem:[%s5] sm:$0xff] %v854
  %859 = vst [vmem:[%s5 + $0x8] sm:$0xff] %v855
  %860 = vst [vmem:[%s5 + $0x10] sm:$0xff] %v856
  %861 = vst [vmem:[%s5 + $0x18] sm:$0xff] %v857
  // Predicated region
  $region22: #{basic_block_forward.1} parent=0 // pred_check
    _
  $region23: #{basic_block_forward.1} parent=0 // pred_check_branch
    %863 = sbr.rel (0) target = $region25
  $region24: #{basic_block_forward.1} parent=0 // pred_region
    _
  $region25: #{basic_block_forward.1} parent=0 // pred_fallthru
    _
  // Predicated region
  $region26: #{basic_block_forward.1} parent=0 // pred_check
    _
  $region27: #{basic_block_forward.1} parent=0 // pred_check_branch
    %865 = sbr.rel (0) target = $region29
  $region28: #{basic_block_forward.1} parent=0 // pred_region
    _
  $region29: #{basic_block_forward.1} parent=0 // pred_fallthru
    _

</llo_original>
